<compile_context>
chip_gen: v6e
topology: v6e:2x2x1
jax: 0.10.0
libtpu: 0.0.40
codegen_flags: <defaults>
</compile_context>

<pallas_src>
import functools

import jax
import jax.numpy as jnp
import numpy as np
from jax.experimental import pallas as pl
from jax.experimental.pallas import tpu as pltpu


def cil_block_kernel(x_ref, cw_ref, cb_ref, pool_ref, wcomb_ref, bcomb_ref,
                     out_ref, *, offsets, win, mxu_dtype):
    """One grid step processes a block of Bb images.

    x_ref     : (C, Bb*L + max_off)  raw zero-padded images; spatial is flattened
                                     onto the lane axis, each image owns a
                                     contiguous L-wide lane range.
    cw_ref    : (D, 9*C)             conv weight (already in mxu_dtype),
                                     columns ordered (kk-major, c)
    cb_ref    : (D, 1)               conv bias (f32)
    pool_ref  : (Bb, Bb*L)           constant masked-mean pooling matrix:
                                     pool[b, b*L + p] = 1/(H*W) on valid spatial
                                     positions p of image b, 0 elsewhere.
    wcomb_ref : (D, NCp + Dp)        [classifier weights | identity], lane-padded
    bcomb_ref : (1, NCp + Dp)        [classifier biases  | zeros   ]
    out_ref   : (Bb, NCp + Dp)       [logits | features] lane-dense output slab
    """
    # ---- in-kernel im2col: nine statically lane-shifted views of the raw images.
    # Columns that cross a row / image boundary are garbage but finite; they are
    # zeroed out by the pooling matrix below, so no masking is needed here.
    img = x_ref[...]
    pieces = [img[:, off:off + win] for off in offsets]       # 9 x (C, Bb*L)
    patches_t = jnp.concatenate(pieces, axis=0)               # (9*C, Bb*L)

    # ---- conv for the whole block as one MXU matmul + bias + ReLU (f32 acc) ----
    conv_t = jnp.dot(cw_ref[...],
                     patches_t.astype(mxu_dtype),
                     preferred_element_type=jnp.float32)      # (D, Bb*L)
    conv_t = jnp.maximum(conv_t + cb_ref[...], 0.0)

    # ---- masked global average pool of all Bb images: one NT matmul ------------
    feats = jax.lax.dot_general(
        pool_ref[...], conv_t,
        dimension_numbers=(((1,), (1,)), ((), ())),
        preferred_element_type=jnp.float32)                   # (Bb, D)

    # ---- CilClassifier heads + feature passthrough fused in one matmul ---------
    out_ref[...] = (jnp.dot(feats, wcomb_ref[...],
                            preferred_element_type=jnp.float32)
                    + bcomb_ref[...])                          # (Bb, NCp + Dp)


def _round_up(x, m):
    return ((x + m - 1) // m) * m


@functools.partial(jax.jit, static_argnames=("block_b", "use_bf16_mxu"))
def cil_model_forward(x, conv_w, conv_b, fc_w, fc_b, *, block_b=8,
                      use_bf16_mxu=False):
    """CilModel.forward: returns (logits, features).

    x      : [B, C, H, W] f32 (NCHW)
    conv_w : [C*9, D]  synthetic-backbone conv weight (c-major, then kh, kw)
    conv_b : [D]
    fc_w   : [D, NC]   concatenated CilClassifier head weights (transposed)
    fc_b   : [NC]      concatenated CilClassifier head biases
    """
    B, C, H, W = x.shape
    D = conv_w.shape[1]
    NC = fc_w.shape[1]
    Hp, Wp = H + 2, W + 2
    offsets = tuple(dh * Wp + dw for dh in range(3) for dw in range(3))
    L = offsets[-1] + H * Wp          # per-image flattened length incl. slack so
                                      # every shifted window stays in-bounds
    K = 9 * C
    Dp = _round_up(D, 128)            # lane-dense widths for the fused output slab
    NCp = _round_up(NC, 128)

    # Images per grid step.  NOTE(v7x): re-derive block_b against the 64 MiB
    # physical / 32 MiB scoped VMEM (inputs + patches + conv tile), and keep
    # grid >= 2 blocks so both TensorCores get work.
    bb = max(1, min(block_b, B))
    G = -(-B // bb)
    B_pad = G * bb
    win = bb * L                      # conv matmul width per block
    Qp = win + offsets[-1]            # input lane width per block (slice slack)

    # ---- raw (non-im2col'ed) input layout: [G, C, Bb*L + max_off] ----------------
    xp = jnp.pad(x, ((0, B_pad - B), (0, 0), (1, 1), (1, 1)))   # batch + spatial pad
    xflat = xp.reshape(B_pad, C, Hp * Wp)
    xflat = jnp.pad(xflat, ((0, 0), (0, 0), (0, L - Hp * Wp)))
    xblk = (xflat.reshape(G, bb, C, L)
                 .transpose(0, 2, 1, 3)
                 .reshape(G, C, win))
    xblk = jnp.pad(xblk, ((0, 0), (0, 0), (0, offsets[-1])))    # -> (G, C, Qp)

    mxu_dtype = jnp.bfloat16 if use_bf16_mxu else jnp.float32

    # ---- conv weight: rows (c*9 + kk) -> cols (kk*C + c), transposed to (D, K).
    # Pre-cast to the MXU input dtype once here (tiny tensor, saves the per-step
    # in-kernel cast; the weight block is VMEM-resident across the grid).
    w_dk = (conv_w.reshape(C, 9, D).transpose(1, 0, 2).reshape(K, D).T
            ).astype(mxu_dtype)
    cb = conv_b.reshape(D, 1).astype(jnp.float32)

    # ---- constant masked-mean pooling matrix (block-local, built at trace time) --
    p = np.arange(L)
    valid = ((p < H * Wp) & ((p % Wp) < W)).astype(np.float32) / float(H * W)
    pool_np = np.zeros((bb, win), dtype=np.float32)
    for b in range(bb):
        pool_np[b, b * L:(b + 1) * L] = valid
    pool = jnp.asarray(pool_np)

    # ---- classifier weights + identity passthrough, lane-padded to 128-slabs -----
    wcomb = jnp.concatenate(
        [jnp.pad(fc_w, ((0, 0), (0, NCp - NC))),
         jnp.pad(jnp.eye(D, dtype=jnp.float32), ((0, 0), (0, Dp - D)))], axis=1)
    bcomb = jnp.concatenate(
        [jnp.pad(fc_b, (0, NCp - NC)),
         jnp.zeros((Dp,), jnp.float32)]).reshape(1, -1)

    kernel = functools.partial(cil_block_kernel, offsets=offsets, win=win,
                               mxu_dtype=mxu_dtype)

    grid_spec = pltpu.PrefetchScalarGridSpec(
        num_scalar_prefetch=0,
        grid=(G,),
        in_specs=[
            pl.BlockSpec((pl.Squeezed(), C, Qp), lambda i: (i, 0, 0)),
            pl.BlockSpec((D, K), lambda i: (0, 0)),
            pl.BlockSpec((D, 1), lambda i: (0, 0)),
            pl.BlockSpec((bb, win), lambda i: (0, 0)),
            pl.BlockSpec((D, NCp + Dp), lambda i: (0, 0)),
            pl.BlockSpec((1, NCp + Dp), lambda i: (0, 0)),
        ],
        out_specs=pl.BlockSpec((pl.Squeezed(), bb, NCp + Dp),
                               lambda i: (i, 0, 0)),
    )

    flops = int(2 * G * (D * K * win + bb * D * win + bb * D * (NCp + Dp)))
    bytes_accessed = int(4 * xblk.size
                         + w_dk.dtype.itemsize * w_dk.size
                         + 4 * (cb.size + pool.size + wcomb.size + bcomb.size)
                         + 4 * G * bb * (NCp + Dp))

    out3 = pl.pallas_call(
        kernel,
        out_shape=jax.ShapeDtypeStruct((G, bb, NCp + Dp), jnp.float32),
        grid_spec=grid_spec,
        compiler_params=pltpu.CompilerParams(
            dimension_semantics=("parallel",)),
        cost_estimate=pl.CostEstimate(flops=flops, transcendentals=0,
                                      bytes_accessed=bytes_accessed),
    )(xblk, w_dk, cb, pool, wcomb, bcomb)

    out2 = out3.reshape(B_pad, NCp + Dp)
    logits = out2[:B, :NC]
    feats = out2[:B, NCp:NCp + D]
    return logits, feats


# --------------------------- pure-JAX reference ------------------------------------
def _im2col_3x3_same(x):
    """Reference-only helper: [B, C, H, W] -> [B, H*W, C*9] (c-major, then kh, kw)."""
    B, C, H, W = x.shape
    xp = jnp.pad(x, ((0, 0), (0, 0), (1, 1), (1, 1)))
    cols = []
    for dh in range(3):
        for dw in range(3):
            cols.append(xp[:, :, dh:dh + H, dw:dw + W])
    patches = jnp.stack(cols, axis=2)              # [B, C, 9, H, W]
    patches = patches.transpose(0, 3, 4, 1, 2)     # [B, H, W, C, 9]
    return patches.reshape(B, H * W, C * 9)


def _reference_forward(x, conv_w, conv_b, fc_w, fc_b):
    """Pure-JAX reference of the same computation (correctness check only)."""
    patches = _im2col_3x3_same(x)
    conv = jnp.einsum('bpk,kd->bpd', patches, conv_w) + conv_b
    conv = jnp.maximum(conv, 0.0)
    feat = jnp.mean(conv, axis=1)
    logits = feat @ fc_w + fc_b
    return logits, feat


if __name__ == "__main__":
    key = jax.random.PRNGKey(0)
    k_x, k_cw, k_cb, k_w0, k_b0, k_w1, k_b1, k_x2 = jax.random.split(key, 8)

    # Small deterministic configuration (NCHW input, two CilClassifier heads).
    B, C, H, W = 2, 4, 16, 16
    D = 32                               # backbone.out_dim (feature_dim)
    NC0, NC1 = 8, 4                      # two heads -> 12 classes total

    x = jax.random.normal(k_x, (B, C, H, W), dtype=jnp.float32)

    # Synthetic backbone conv: torch weight [D, C, 3, 3] -> [C*3*3, D] (c-major).
    conv_w = 0.1 * jax.random.normal(k_cw, (C * 9, D), dtype=jnp.float32)
    conv_b = 0.1 * jax.random.normal(k_cb, (D,), dtype=jnp.float32)

    # CilClassifier heads (after prev_model_adaption + one adaption), concatenated.
    w0 = 0.1 * jax.random.normal(k_w0, (NC0, D), dtype=jnp.float32)
    b0 = 0.1 * jax.random.normal(k_b0, (NC0,), dtype=jnp.float32)
    w1 = 0.1 * jax.random.normal(k_w1, (NC1, D), dtype=jnp.float32)
    b1 = 0.1 * jax.random.normal(k_b1, (NC1,), dtype=jnp.float32)
    fc_w = jnp.concatenate([w0, w1], axis=0).T        # [D, 12]
    fc_b = jnp.concatenate([b0, b1], axis=0)          # [12]

    # --- config 1: f32 path, single block ------------------------------------------
    logits, feats = cil_model_forward(x, conv_w, conv_b, fc_w, fc_b)
    jax.block_until_ready((logits, feats))
    ref_logits, ref_feats = _reference_forward(x, conv_w, conv_b, fc_w, fc_b)
    assert logits.shape == (B, NC0 + NC1) and feats.shape == (B, D)
    # f32 everywhere; tolerance leaves room for different reduction association.
    assert jnp.allclose(logits, ref_logits, atol=1e-4, rtol=1e-4)
    assert jnp.allclose(feats, ref_feats, atol=1e-4, rtol=1e-4)

    # --- config 2: non-multiple batch, multi-block grid, bf16 MXU conv inputs -------
    B2 = 10
    x2 = jax.random.normal(k_x2, (B2, C, H, W), dtype=jnp.float32)
    logits2, feats2 = cil_model_forward(x2, conv_w, conv_b, fc_w, fc_b,
                                        block_b=4, use_bf16_mxu=True)
    jax.block_until_ready((logits2, feats2))
    ref_logits2, ref_feats2 = _reference_forward(x2, conv_w, conv_b, fc_w, fc_b)
    assert logits2.shape == (B2, NC0 + NC1) and feats2.shape == (B2, D)
    assert jnp.allclose(logits2, ref_logits2, atol=2e-2, rtol=2e-2)
    assert jnp.allclose(feats2, ref_feats2, atol=2e-2, rtol=2e-2)

    print("KERNEL_OK")
</pallas_src>

<mosaic_0001>
module attributes {stable_mosaic.version = 11 : i64} {
  func.func @cil_block_kernel(%arg0: i32, %arg1: memref<1x4x690xf32, #tpu.memory_space<vmem>>, %arg2: memref<32x36xf32, #tpu.memory_space<vmem>>, %arg3: memref<32x1xf32, #tpu.memory_space<vmem>>, %arg4: memref<2x652xf32, #tpu.memory_space<vmem>>, %arg5: memref<32x256xf32, #tpu.memory_space<vmem>>, %arg6: memref<1x256xf32, #tpu.memory_space<vmem>>, %arg7: memref<1x2x256xf32, #tpu.memory_space<vmem>>) attributes {dimension_semantics = [#tpu.dimension_semantics<parallel>], iteration_bounds = array<i64: 1>, scalar_prefetch = 0 : i64, scratch_operands = 0 : i64, tpu.core_type = #tpu.core_type<tc>, window_params = [{transform_indices = @transform_0, window_bounds = array<i64: 1, 4, 690>}, {pipeline_mode = #tpu.pipeline_mode<synchronous>, transform_indices = @transform_1, window_bounds = array<i64: 32, 36>}, {pipeline_mode = #tpu.pipeline_mode<synchronous>, transform_indices = @transform_2, window_bounds = array<i64: 32, 1>}, {pipeline_mode = #tpu.pipeline_mode<synchronous>, transform_indices = @transform_3, window_bounds = array<i64: 2, 652>}, {pipeline_mode = #tpu.pipeline_mode<synchronous>, transform_indices = @transform_4, window_bounds = array<i64: 32, 256>}, {pipeline_mode = #tpu.pipeline_mode<synchronous>, transform_indices = @transform_5, window_bounds = array<i64: 1, 256>}, {transform_indices = @transform_6, window_bounds = array<i64: 1, 2, 256>}]} {
    %c0 = arith.constant 0 : index
    %c0_0 = arith.constant 0 : index
    %c0_1 = arith.constant 0 : index
    %0 = vector.load %arg1[%c0, %c0_0, %c0_1] : memref<1x4x690xf32, #tpu.memory_space<vmem>>, vector<1x4x690xf32>
    %1 = vector.shape_cast %0 : vector<1x4x690xf32> to vector<4x690xf32>
    %2 = vector.extract_strided_slice %1 {offsets = [0, 0], sizes = [4, 652], strides = [1, 1]} : vector<4x690xf32> to vector<4x652xf32>
    %3 = vector.extract_strided_slice %1 {offsets = [0, 1], sizes = [4, 652], strides = [1, 1]} : vector<4x690xf32> to vector<4x652xf32>
    %4 = vector.extract_strided_slice %1 {offsets = [0, 2], sizes = [4, 652], strides = [1, 1]} : vector<4x690xf32> to vector<4x652xf32>
    %5 = vector.extract_strided_slice %1 {offsets = [0, 18], sizes = [4, 652], strides = [1, 1]} : vector<4x690xf32> to vector<4x652xf32>
    %6 = vector.extract_strided_slice %1 {offsets = [0, 19], sizes = [4, 652], strides = [1, 1]} : vector<4x690xf32> to vector<4x652xf32>
    %7 = vector.extract_strided_slice %1 {offsets = [0, 20], sizes = [4, 652], strides = [1, 1]} : vector<4x690xf32> to vector<4x652xf32>
    %8 = vector.extract_strided_slice %1 {offsets = [0, 36], sizes = [4, 652], strides = [1, 1]} : vector<4x690xf32> to vector<4x652xf32>
    %9 = vector.extract_strided_slice %1 {offsets = [0, 37], sizes = [4, 652], strides = [1, 1]} : vector<4x690xf32> to vector<4x652xf32>
    %10 = vector.extract_strided_slice %1 {offsets = [0, 38], sizes = [4, 652], strides = [1, 1]} : vector<4x690xf32> to vector<4x652xf32>
    %11 = tpu.concatenate %2, %3, %4, %5, %6, %7, %8, %9, %10 in 0 : vector<4x652xf32>, vector<4x652xf32>, vector<4x652xf32>, vector<4x652xf32>, vector<4x652xf32>, vector<4x652xf32>, vector<4x652xf32>, vector<4x652xf32>, vector<4x652xf32> -> vector<36x652xf32>
    %c0_2 = arith.constant 0 : index
    %c0_3 = arith.constant 0 : index
    %12 = vector.load %arg2[%c0_2, %c0_3] : memref<32x36xf32, #tpu.memory_space<vmem>>, vector<32x36xf32>
    %cst = arith.constant dense<0.000000e+00> : vector<32x652xf32>
    %13 = tpu.matmul %12, %11, %cst {dimension_numbers = #tpu.dot_dimension_numbers<[1], [0], [0], [1], [0, 0, 1, 1], [], []>} : vector<32x36xf32>, vector<36x652xf32>, vector<32x652xf32> -> vector<32x652xf32>
    %c0_4 = arith.constant 0 : index
    %c0_5 = arith.constant 0 : index
    %14 = vector.load %arg3[%c0_4, %c0_5] : memref<32x1xf32, #tpu.memory_space<vmem>>, vector<32x1xf32>
    %15 = vector.broadcast %14 : vector<32x1xf32> to vector<32x652xf32>
    %16 = arith.addf %13, %15 : vector<32x652xf32>
    %cst_6 = arith.constant 0.000000e+00 : f32
    %17 = vector.broadcast %cst_6 : f32 to vector<32x652xf32>
    %18 = arith.maximumf %16, %17 : vector<32x652xf32>
    %c0_7 = arith.constant 0 : index
    %c0_8 = arith.constant 0 : index
    %19 = vector.load %arg4[%c0_7, %c0_8] : memref<2x652xf32, #tpu.memory_space<vmem>>, vector<2x652xf32>
    %cst_9 = arith.constant dense<0.000000e+00> : vector<2x32xf32>
    %20 = tpu.matmul %19, %18, %cst_9 {dimension_numbers = #tpu.dot_dimension_numbers<[1], [1], [0], [0], [0, 0, 1, 0], [], []>} : vector<2x652xf32>, vector<32x652xf32>, vector<2x32xf32> -> vector<2x32xf32>
    %c0_10 = arith.constant 0 : index
    %c0_11 = arith.constant 0 : index
    %21 = vector.load %arg5[%c0_10, %c0_11] : memref<32x256xf32, #tpu.memory_space<vmem>>, vector<32x256xf32>
    %cst_12 = arith.constant dense<0.000000e+00> : vector<2x256xf32>
    %22 = tpu.matmul %20, %21, %cst_12 {dimension_numbers = #tpu.dot_dimension_numbers<[1], [0], [0], [1], [0, 0, 1, 1], [], []>} : vector<2x32xf32>, vector<32x256xf32>, vector<2x256xf32> -> vector<2x256xf32>
    %c0_13 = arith.constant 0 : index
    %c0_14 = arith.constant 0 : index
    %23 = vector.load %arg6[%c0_13, %c0_14] : memref<1x256xf32, #tpu.memory_space<vmem>>, vector<1x256xf32>
    %24 = vector.broadcast %23 : vector<1x256xf32> to vector<2x256xf32>
    %25 = arith.addf %22, %24 : vector<2x256xf32>
    %c0_15 = arith.constant 0 : index
    %c0_16 = arith.constant 0 : index
    %c0_17 = arith.constant 0 : index
    %26 = vector.load %arg7[%c0_15, %c0_16, %c0_17] : memref<1x2x256xf32, #tpu.memory_space<vmem>>, vector<1x2x256xf32>
    %27 = vector.shape_cast %26 : vector<1x2x256xf32> to vector<2x256xf32>
    %28 = vector.shape_cast %25 : vector<2x256xf32> to vector<1x2x256xf32>
    tpu.vector_store %arg7[%c0_15, %c0_16, %c0_17], %28 {strides = array<i32>} : memref<1x2x256xf32, #tpu.memory_space<vmem>>, vector<1x2x256xf32>,
    return
  }
  func.func @transform_0(%arg0: i32) -> (i32, i32, i32) {
    %c0_i32 = arith.constant 0 : i32
    %c0_i32_0 = arith.constant 0 : i32
    %c0_i32_1 = arith.constant 0 : i32
    return %arg0, %c0_i32, %c0_i32_0 : i32, i32, i32
  }
  func.func @transform_1(%arg0: i32) -> (i32, i32) {
    %c0_i32 = arith.constant 0 : i32
    %c0_i32_0 = arith.constant 0 : i32
    %c0_i32_1 = arith.constant 0 : i32
    return %c0_i32, %c0_i32_0 : i32, i32
  }
  func.func @transform_2(%arg0: i32) -> (i32, i32) {
    %c0_i32 = arith.constant 0 : i32
    %c0_i32_0 = arith.constant 0 : i32
    %c0_i32_1 = arith.constant 0 : i32
    return %c0_i32, %c0_i32_0 : i32, i32
  }
  func.func @transform_3(%arg0: i32) -> (i32, i32) {
    %c0_i32 = arith.constant 0 : i32
    %c0_i32_0 = arith.constant 0 : i32
    %c0_i32_1 = arith.constant 0 : i32
    return %c0_i32, %c0_i32_0 : i32, i32
  }
  func.func @transform_4(%arg0: i32) -> (i32, i32) {
    %c0_i32 = arith.constant 0 : i32
    %c0_i32_0 = arith.constant 0 : i32
    %c0_i32_1 = arith.constant 0 : i32
    return %c0_i32, %c0_i32_0 : i32, i32
  }
  func.func @transform_5(%arg0: i32) -> (i32, i32) {
    %c0_i32 = arith.constant 0 : i32
    %c0_i32_0 = arith.constant 0 : i32
    %c0_i32_1 = arith.constant 0 : i32
    return %c0_i32, %c0_i32_0 : i32, i32
  }
  func.func @transform_6(%arg0: i32) -> (i32, i32, i32) {
    %c0_i32 = arith.constant 0 : i32
    %c0_i32_0 = arith.constant 0 : i32
    %c0_i32_1 = arith.constant 0 : i32
    return %arg0, %c0_i32, %c0_i32_0 : i32, i32, i32
  }
}

</mosaic_0001>

<llo_original>
// kernel: cil_model_forward.1
$region0: #{cil_model_forward.1}
  #allocation0 [shape = 'u32[]', space=smem, size = 0x4, offset = 0x4, fixed_abs, tag = 'smem constant byte address 0x4 - core index']
  #allocation1 [shape = 'u32[144,128]{1,0:T(1,128)}', space=vmem, size = 0x12000, scoped, tag = 'internal scratch']
  %s0 = inlined_call_operand.vmem [shape: f32[1,4,690], index: 0, kind: input, shape index: {}]
  %s1 = inlined_call_operand.vmem [shape: f32[32,36], index: 1, kind: input, shape index: {}]
  %s2 = inlined_call_operand.vmem [shape: f32[32,1], index: 2, kind: input, shape index: {}]
  %s3 = inlined_call_operand.vmem [shape: f32[2,652], index: 3, kind: input, shape index: {}]
  %s4 = inlined_call_operand.vmem [shape: f32[32,256], index: 4, kind: input, shape index: {}]
  %s5 = inlined_call_operand.vmem [shape: f32[1,256], index: 5, kind: input, shape index: {}]
  %s6 = inlined_call_operand.vmem [shape: f32[1,2,256], index: 6, kind: output, shape index: {}]
  %s7 = sld [smem:[#allocation0]]
  $region34: #{cil_model_forward.1} parent=0
    _
  %s9 = ssub.s32 1, %s7
  %s10 = scalar_select 0, %s9, %s7
  // Predicated region
  $region2: #{cil_model_forward.1} parent=0 // pred_check
    _
  $region3: #{cil_model_forward.1} parent=0 // pred_check_branch
    %12 = sbr.rel (0) target = $region5
  $region4: #{cil_model_forward.1} parent=0 // pred_region
    _
  $region5: #{cil_model_forward.1} parent=0 // pred_fallthru
    _
  // Predicated region
  $region6: #{cil_model_forward.1} parent=0 // pred_check
    _
  $region7: #{cil_model_forward.1} parent=0 // pred_check_branch
    %14 = sbr.rel (0) target = $region9
  $region8: #{cil_model_forward.1} parent=0 // pred_region
    _
  $region9: #{cil_model_forward.1} parent=0 // pred_fallthru
    _
  // Predicated region
  $region10: #{cil_model_forward.1} parent=0 // pred_check
    _
  $region11: #{cil_model_forward.1} parent=0 // pred_check_branch
    %16 = sbr.rel (0) target = $region13
  $region12: #{cil_model_forward.1} parent=0 // pred_region
    _
  $region13: #{cil_model_forward.1} parent=0 // pred_fallthru
    _
  // Predicated region
  $region14: #{cil_model_forward.1} parent=0 // pred_check
    _
  $region15: #{cil_model_forward.1} parent=0 // pred_check_branch
    %18 = sbr.rel (0) target = $region17
  $region16: #{cil_model_forward.1} parent=0 // pred_region
    _
  $region17: #{cil_model_forward.1} parent=0 // pred_fallthru
    _
  // Predicated region
  $region18: #{cil_model_forward.1} parent=0 // pred_check
    _
  $region19: #{cil_model_forward.1} parent=0 // pred_check_branch
    %20 = sbr.rel (0) target = $region21
  $region20: #{cil_model_forward.1} parent=0 // pred_region
    _
  $region21: #{cil_model_forward.1} parent=0 // pred_fallthru
    _
  // Predicated region
  $region22: #{cil_model_forward.1} parent=0 // pred_check
    _
  $region23: #{cil_model_forward.1} parent=0 // pred_check_branch
    %22 = sbr.rel (0) target = $region25
  $region24: #{cil_model_forward.1} parent=0 // pred_region
    _
  $region25: #{cil_model_forward.1} parent=0 // pred_fallthru
    _
  %v23 = vld [vmem:[%s0] sm:$0xff]
  %v24 = vld [vmem:[%s0 + $0x8] sm:$0xff]
  %v25 = vld [vmem:[%s0 + $0x10] sm:$0xff]
  %v29 = vcombine.high %v23, %v23
  %v30 = vcombine.high %v24, %v24
  %v31 = vcombine.high %v25, %v25
  %v35 = vcombine.low %v23, %v23
  %v36 = vcombine.low %v24, %v24
  %v37 = vcombine.low %v25, %v25
  %38 = vrot.lane.b32.xlu0 %v35, 127
  %v39 = vpop.permute.xlu0 %38
  %40 = vrot.lane.b32.xlu0 %v23, 127
  %v41 = vpop.permute.xlu0 %40
  %42 = vrot.lane.b32.xlu0 %v36, 127
  %v43 = vpop.permute.xlu0 %42
  %44 = vrot.lane.b32.xlu0 %v24, 127
  %v45 = vpop.permute.xlu0 %44
  %46 = vrot.lane.b32.xlu0 %v37, 127
  %v47 = vpop.permute.xlu0 %46
  %48 = vrot.lane.b32.xlu0 %v25, 127
  %v49 = vpop.permute.xlu0 %48
  %vm50 = vcmask 1039360
  %v51 = vsel %vm50, %v39, %v41
  %v52 = vsel %vm50, %v41, %v43
  %v53 = vsel %vm50, %v43, %v45
  %v54 = vsel %vm50, %v45, %v47
  %v55 = vsel %vm50, %v47, %v49
  %62 = vrot.lane.b32.xlu0 %v23, 126
  %v63 = vpop.permute.xlu0 %62
  %64 = vrot.lane.b32.xlu0 %v29, 126
  %v65 = vpop.permute.xlu0 %64
  %66 = vrot.lane.b32.xlu0 %v24, 126
  %v67 = vpop.permute.xlu0 %66
  %68 = vrot.lane.b32.xlu0 %v30, 126
  %v69 = vpop.permute.xlu0 %68
  %70 = vrot.lane.b32.xlu0 %v25, 126
  %v71 = vpop.permute.xlu0 %70
  %72 = vrot.lane.b32.xlu0 %v31, 126
  %v73 = vpop.permute.xlu0 %72
  %vm74 = vcmask 1031168
  %v75 = vsel %vm74, %v63, %v65
  %v76 = vsel %vm74, %v65, %v67
  %v77 = vsel %vm74, %v67, %v69
  %v78 = vsel %vm74, %v69, %v71
  %v79 = vsel %vm74, %v71, %v73
  %86 = vrot.lane.b32.xlu0 %v35, 110
  %v87 = vpop.permute.xlu0 %86
  %88 = vrot.lane.b32.xlu0 %v23, 110
  %v89 = vpop.permute.xlu0 %88
  %90 = vrot.lane.b32.xlu0 %v36, 110
  %v91 = vpop.permute.xlu0 %90
  %92 = vrot.lane.b32.xlu0 %v24, 110
  %v93 = vpop.permute.xlu0 %92
  %94 = vrot.lane.b32.xlu0 %v37, 110
  %v95 = vpop.permute.xlu0 %94
  %96 = vrot.lane.b32.xlu0 %v25, 110
  %v97 = vpop.permute.xlu0 %96
  %vm98 = vcmask 900096
  %v99 = vsel %vm98, %v87, %v89
  %v100 = vsel %vm98, %v89, %v91
  %v101 = vsel %vm98, %v91, %v93
  %v102 = vsel %vm98, %v93, %v95
  %v103 = vsel %vm98, %v95, %v97
  %110 = vrot.lane.b32.xlu0 %v23, 109
  %v111 = vpop.permute.xlu0 %110
  %112 = vrot.lane.b32.xlu0 %v29, 109
  %v113 = vpop.permute.xlu0 %112
  %114 = vrot.lane.b32.xlu0 %v24, 109
  %v115 = vpop.permute.xlu0 %114
  %116 = vrot.lane.b32.xlu0 %v30, 109
  %v117 = vpop.permute.xlu0 %116
  %118 = vrot.lane.b32.xlu0 %v25, 109
  %v119 = vpop.permute.xlu0 %118
  %120 = vrot.lane.b32.xlu0 %v31, 109
  %v121 = vpop.permute.xlu0 %120
  %vm122 = vcmask 891904
  %v123 = vsel %vm122, %v111, %v113
  %v124 = vsel %vm122, %v113, %v115
  %v125 = vsel %vm122, %v115, %v117
  %v126 = vsel %vm122, %v117, %v119
  %v127 = vsel %vm122, %v119, %v121
  %134 = vrot.lane.b32.xlu0 %v35, 108
  %v135 = vpop.permute.xlu0 %134
  %136 = vrot.lane.b32.xlu0 %v23, 108
  %v137 = vpop.permute.xlu0 %136
  %138 = vrot.lane.b32.xlu0 %v36, 108
  %v139 = vpop.permute.xlu0 %138
  %140 = vrot.lane.b32.xlu0 %v24, 108
  %v141 = vpop.permute.xlu0 %140
  %142 = vrot.lane.b32.xlu0 %v37, 108
  %v143 = vpop.permute.xlu0 %142
  %144 = vrot.lane.b32.xlu0 %v25, 108
  %v145 = vpop.permute.xlu0 %144
  %vm146 = vcmask 883712
  %v147 = vsel %vm146, %v135, %v137
  %v148 = vsel %vm146, %v137, %v139
  %v149 = vsel %vm146, %v139, %v141
  %v150 = vsel %vm146, %v141, %v143
  %v151 = vsel %vm146, %v143, %v145
  %158 = vrot.lane.b32.xlu0 %v23, 92
  %v159 = vpop.permute.xlu0 %158
  %160 = vrot.lane.b32.xlu0 %v29, 92
  %v161 = vpop.permute.xlu0 %160
  %162 = vrot.lane.b32.xlu0 %v24, 92
  %v163 = vpop.permute.xlu0 %162
  %164 = vrot.lane.b32.xlu0 %v30, 92
  %v165 = vpop.permute.xlu0 %164
  %166 = vrot.lane.b32.xlu0 %v25, 92
  %v167 = vpop.permute.xlu0 %166
  %168 = vrot.lane.b32.xlu0 %v31, 92
  %v169 = vpop.permute.xlu0 %168
  %vm170 = vcmask 752640
  %v171 = vsel %vm170, %v159, %v161
  %v172 = vsel %vm170, %v161, %v163
  %v173 = vsel %vm170, %v163, %v165
  %v174 = vsel %vm170, %v165, %v167
  %v175 = vsel %vm170, %v167, %v169
  %182 = vrot.lane.b32.xlu0 %v35, 91
  %v183 = vpop.permute.xlu0 %182
  %184 = vrot.lane.b32.xlu0 %v23, 91
  %v185 = vpop.permute.xlu0 %184
  %186 = vrot.lane.b32.xlu0 %v36, 91
  %v187 = vpop.permute.xlu0 %186
  %188 = vrot.lane.b32.xlu0 %v24, 91
  %v189 = vpop.permute.xlu0 %188
  %190 = vrot.lane.b32.xlu0 %v37, 91
  %v191 = vpop.permute.xlu0 %190
  %192 = vrot.lane.b32.xlu0 %v25, 91
  %v193 = vpop.permute.xlu0 %192
  %vm194 = vcmask 744448
  %v195 = vsel %vm194, %v183, %v185
  %v196 = vsel %vm194, %v185, %v187
  %v197 = vsel %vm194, %v187, %v189
  %v198 = vsel %vm194, %v189, %v191
  %v199 = vsel %vm194, %v191, %v193
  %206 = vrot.lane.b32.xlu0 %v23, 90
  %v207 = vpop.permute.xlu0 %206
  %208 = vrot.lane.b32.xlu0 %v29, 90
  %v209 = vpop.permute.xlu0 %208
  %210 = vrot.lane.b32.xlu0 %v24, 90
  %v211 = vpop.permute.xlu0 %210
  %212 = vrot.lane.b32.xlu0 %v30, 90
  %v213 = vpop.permute.xlu0 %212
  %214 = vrot.lane.b32.xlu0 %v25, 90
  %v215 = vpop.permute.xlu0 %214
  %216 = vrot.lane.b32.xlu0 %v31, 90
  %v217 = vpop.permute.xlu0 %216
  %vm218 = vcmask 736256
  %v219 = vsel %vm218, %v207, %v209
  %v220 = vsel %vm218, %v209, %v211
  %v221 = vsel %vm218, %v211, %v213
  %v222 = vsel %vm218, %v213, %v215
  %v223 = vsel %vm218, %v215, %v217
  %vm224 = vcmask 1043456
  %v225 = vsel %vm224, %v23, %v51
  %v226 = vsel %vm224, %v29, %v52
  %v227 = vsel %vm224, %v24, %v53
  %v228 = vsel %vm224, %v30, %v54
  %v229 = vsel %vm224, %v25, %v55
  %v230 = vsel %vm224, %v31, %v49
  %v231 = vsel %vm224, %v75, %v99
  %v232 = vsel %vm224, %v76, %v100
  %v233 = vsel %vm224, %v77, %v101
  %v234 = vsel %vm224, %v78, %v102
  %v235 = vsel %vm224, %v79, %v103
  %v236 = vsel %vm224, %v73, %v97
  %v237 = vsel %vm224, %v123, %v147
  %v238 = vsel %vm224, %v124, %v148
  %v239 = vsel %vm224, %v125, %v149
  %v240 = vsel %vm224, %v126, %v150
  %v241 = vsel %vm224, %v127, %v151
  %v242 = vsel %vm224, %v121, %v145
  %v243 = vsel %vm224, %v171, %v195
  %v244 = vsel %vm224, %v172, %v196
  %v245 = vsel %vm224, %v173, %v197
  %v246 = vsel %vm224, %v174, %v198
  %v247 = vsel %vm224, %v175, %v199
  %v248 = vsel %vm224, %v169, %v193
  %v249 = vld [vmem:[%s1] sm:$0xff]
  %v250 = vld [vmem:[%s1 + $0x8] sm:$0xff]
  %v251 = vld [vmem:[%s1 + $0x10] sm:$0xff]
  %v252 = vld [vmem:[%s1 + $0x18] sm:$0xff]
  %v253 = vld [vmem:[%s2] sm:$0xff]
  %v254 = vld [vmem:[%s2 + $0x8] sm:$0xff]
  %v255 = vld [vmem:[%s2 + $0x10] sm:$0xff]
  %v256 = vld [vmem:[%s2 + $0x18] sm:$0xff]
  %258 = vset.pattern.permute.xlu0 0
  %259 = vperm.xlu0 %258, %v253
  %v260 = vpop.permute.xlu0 %259
  %263 = vset.pattern.permute.xlu0 0
  %264 = vperm.xlu0 %263, %v254
  %v265 = vpop.permute.xlu0 %264
  %268 = vset.pattern.permute.xlu0 0
  %269 = vperm.xlu0 %268, %v255
  %v270 = vpop.permute.xlu0 %269
  %273 = vset.pattern.permute.xlu0 0
  %274 = vperm.xlu0 %273, %v256
  %v275 = vpop.permute.xlu0 %274
  %vm277 = vcmask 293888
  %v279 = vsel %vm277, %v249, 0
  %v282 = vsel %vm277, %v250, 0
  %v285 = vsel %vm277, %v251, 0
  %v288 = vsel %vm277, %v252, 0
  %v290 = vsel %vm224, %v219, 0
  %v292 = vsel %vm224, %v220, 0
  %v294 = vsel %vm224, %v221, 0
  %v296 = vsel %vm224, %v222, 0
  %v298 = vsel %vm224, %v223, 0
  %v300 = vsel %vm224, %v217, 0
  %302 = vmatprep.subr.mxu0 0.0
  %303 = vmatpush1.msra.mxu0 0.0
  %304 = vmatprep.subr.mxu0 0.0
  %305 = vmatpush1.msra.mxu0 0.0
  %306 = vmatprep.subr.mxu0 0.0
  %307 = vmatpush1.msra.mxu0 0.0
  %308 = vmatprep.subr.mxu0 0.0
  %309 = vmatpush1.msra.mxu0 0.0
  %310 = vmatprep.subr.mxu0 0.0
  %311 = vmatpush1.msra.mxu0 0.0
  %312 = vmatprep.subr.mxu0 0.0
  %313 = vmatpush1.msra.mxu0 0.0
  %314 = vmatprep.subr.mxu0 0.0
  %315 = vmatpush1.msra.mxu0 0.0
  %316 = vmatprep.subr.mxu0 0.0
  %317 = vmatpush1.msra.mxu0 0.0
  %318 = vmatprep.subr.mxu0 0.0
  %319 = vmatpush1.msra.mxu0 0.0
  %320 = vmatprep.subr.mxu0 0.0
  %321 = vmatpush1.msra.mxu0 0.0
  %322 = vmatprep.subr.mxu0 0.0
  %323 = vmatpush1.msra.mxu0 0.0
  %324 = vmatprep.subr.mxu0 %v292
  %325 = vmatpush1.msra.mxu0 %v290
  %326 = vmatprep.subr.mxu0 %v244
  %327 = vmatpush1.msra.mxu0 %v243
  %328 = vmatprep.subr.mxu0 %v238
  %329 = vmatpush1.msra.mxu0 %v237
  %330 = vmatprep.subr.mxu0 %v232
  %331 = vmatpush1.msra.mxu0 %v231
  %332 = vmatprep.subr.mxu0 %v226
  %333 = vmatpush1.msra.mxu0 %v225
  %334 = vmatprep.subr.mxu0 0.0
  %335 = vmatpush2.msra.mxu0 0.0
  %336 = vmatprep.subr.mxu0 0.0
  %337 = vmatpush2.msra.mxu0 0.0
  %338 = vmatprep.subr.mxu0 0.0
  %339 = vmatpush2.msra.mxu0 0.0
  %340 = vmatprep.subr.mxu0 0.0
  %341 = vmatpush2.msra.mxu0 0.0
  %342 = vmatprep.subr.mxu0 0.0
  %343 = vmatpush2.msra.mxu0 0.0
  %344 = vmatprep.subr.mxu0 0.0
  %345 = vmatpush2.msra.mxu0 0.0
  %346 = vmatprep.subr.mxu0 0.0
  %347 = vmatpush2.msra.mxu0 0.0
  %348 = vmatprep.subr.mxu0 0.0
  %349 = vmatpush2.msra.mxu0 0.0
  %350 = vmatprep.subr.mxu0 0.0
  %351 = vmatpush2.msra.mxu0 0.0
  %352 = vmatprep.subr.mxu0 0.0
  %353 = vmatpush2.msra.mxu0 0.0
  %354 = vmatprep.subr.mxu0 0.0
  %355 = vmatpush2.msra.mxu0 0.0
  %356 = vmatprep.subr.mxu0 0.0
  %357 = vmatpush2.msra.mxu0 0.0
  %358 = vmatprep.subr.mxu0 0.0
  %359 = vmatpush2.msra.mxu0 0.0
  %360 = vmatprep.subr.mxu0 0.0
  %361 = vmatpush2.msra.mxu0 0.0
  %362 = vmatprep.subr.mxu0 0.0
  %363 = vmatpush2.msra.mxu0 0.0
  %364 = vmatprep.subr.mxu0 0.0
  %365 = vmatpush2.msra.mxu0 0.0
  %366 = vmatprep.mubr.f32.mxu0 0.0
  %367 = vmatmul.mubr.f32.gmra.mxu0 %v279
  %v368 = vpop.f32.mrf.mxu0
  %v369 = vadd.f32 %v260, %v368
  %v370 = vpop.f32.mrf.mxu0
  %v371 = vadd.f32 %v260, %v370
  %372 = vmatprep.mubr.f32.mxu0 0.0
  %373 = vmatmul.mubr.f32.gmra.mxu0 %v282
  %v374 = vpop.f32.mrf.mxu0
  %v375 = vadd.f32 %v265, %v374
  %v376 = vpop.f32.mrf.mxu0
  %v377 = vadd.f32 %v265, %v376
  %378 = vmatprep.mubr.f32.mxu0 0.0
  %379 = vmatmul.mubr.f32.gmra.mxu0 %v285
  %v380 = vpop.f32.mrf.mxu0
  %v381 = vadd.f32 %v270, %v380
  %v382 = vpop.f32.mrf.mxu0
  %v383 = vadd.f32 %v270, %v382
  %384 = vmatprep.mubr.f32.mxu0 0.0
  %385 = vmatmul.mubr.f32.gmra.mxu0 %v288
  %v386 = vpop.f32.mrf.mxu0
  %v387 = vadd.f32 %v275, %v386
  %v388 = vpop.f32.mrf.mxu0
  %v389 = vadd.f32 %v275, %v388
  %390 = vdwg.mxu0
  %391 = vmatprep.subr.mxu0 0.0
  %392 = vmatpush1.msra.mxu0 0.0
  %393 = vmatprep.subr.mxu0 0.0
  %394 = vmatpush1.msra.mxu0 0.0
  %395 = vmatprep.subr.mxu0 0.0
  %396 = vmatpush1.msra.mxu0 0.0
  %397 = vmatprep.subr.mxu0 0.0
  %398 = vmatpush1.msra.mxu0 0.0
  %399 = vmatprep.subr.mxu0 0.0
  %400 = vmatpush1.msra.mxu0 0.0
  %401 = vmatprep.subr.mxu0 0.0
  %402 = vmatpush1.msra.mxu0 0.0
  %403 = vmatprep.subr.mxu0 0.0
  %404 = vmatpush1.msra.mxu0 0.0
  %405 = vmatprep.subr.mxu0 0.0
  %406 = vmatpush1.msra.mxu0 0.0
  %407 = vmatprep.subr.mxu0 0.0
  %408 = vmatpush1.msra.mxu0 0.0
  %409 = vmatprep.subr.mxu0 0.0
  %410 = vmatpush1.msra.mxu0 0.0
  %411 = vmatprep.subr.mxu0 0.0
  %412 = vmatpush1.msra.mxu0 0.0
  %413 = vmatprep.subr.mxu0 %v296
  %414 = vmatpush1.msra.mxu0 %v294
  %415 = vmatprep.subr.mxu0 %v246
  %416 = vmatpush1.msra.mxu0 %v245
  %417 = vmatprep.subr.mxu0 %v240
  %418 = vmatpush1.msra.mxu0 %v239
  %419 = vmatprep.subr.mxu0 %v234
  %420 = vmatpush1.msra.mxu0 %v233
  %421 = vmatprep.subr.mxu0 %v228
  %422 = vmatpush1.msra.mxu0 %v227
  %423 = vmatprep.subr.mxu0 0.0
  %424 = vmatpush2.msra.mxu0 0.0
  %425 = vmatprep.subr.mxu0 0.0
  %426 = vmatpush2.msra.mxu0 0.0
  %427 = vmatprep.subr.mxu0 0.0
  %428 = vmatpush2.msra.mxu0 0.0
  %429 = vmatprep.subr.mxu0 0.0
  %430 = vmatpush2.msra.mxu0 0.0
  %431 = vmatprep.subr.mxu0 0.0
  %432 = vmatpush2.msra.mxu0 0.0
  %433 = vmatprep.subr.mxu0 0.0
  %434 = vmatpush2.msra.mxu0 0.0
  %435 = vmatprep.subr.mxu0 0.0
  %436 = vmatpush2.msra.mxu0 0.0
  %437 = vmatprep.subr.mxu0 0.0
  %438 = vmatpush2.msra.mxu0 0.0
  %439 = vmatprep.subr.mxu0 0.0
  %440 = vmatpush2.msra.mxu0 0.0
  %441 = vmatprep.subr.mxu0 0.0
  %442 = vmatpush2.msra.mxu0 0.0
  %443 = vmatprep.subr.mxu0 0.0
  %444 = vmatpush2.msra.mxu0 0.0
  %445 = vmatprep.subr.mxu0 0.0
  %446 = vmatpush2.msra.mxu0 0.0
  %447 = vmatprep.subr.mxu0 0.0
  %448 = vmatpush2.msra.mxu0 0.0
  %449 = vmatprep.subr.mxu0 0.0
  %450 = vmatpush2.msra.mxu0 0.0
  %451 = vmatprep.subr.mxu0 0.0
  %452 = vmatpush2.msra.mxu0 0.0
  %453 = vmatprep.subr.mxu0 0.0
  %454 = vmatpush2.msra.mxu0 0.0
  %455 = vmatprep.mubr.f32.mxu0 0.0
  %456 = vmatmul.mubr.f32.gmra.mxu0 %v279
  %v457 = vpop.f32.mrf.mxu0
  %v458 = vadd.f32 %v260, %v457
  %v459 = vpop.f32.mrf.mxu0
  %v460 = vadd.f32 %v260, %v459
  %461 = vmatprep.mubr.f32.mxu0 0.0
  %462 = vmatmul.mubr.f32.gmra.mxu0 %v282
  %v463 = vpop.f32.mrf.mxu0
  %v464 = vadd.f32 %v265, %v463
  %v465 = vpop.f32.mrf.mxu0
  %v466 = vadd.f32 %v265, %v465
  %467 = vmatprep.mubr.f32.mxu0 0.0
  %468 = vmatmul.mubr.f32.gmra.mxu0 %v285
  %v469 = vpop.f32.mrf.mxu0
  %v470 = vadd.f32 %v270, %v469
  %v471 = vpop.f32.mrf.mxu0
  %v472 = vadd.f32 %v270, %v471
  %473 = vmatprep.mubr.f32.mxu0 0.0
  %474 = vmatmul.mubr.f32.gmra.mxu0 %v288
  %v475 = vpop.f32.mrf.mxu0
  %v476 = vadd.f32 %v275, %v475
  %v477 = vpop.f32.mrf.mxu0
  %v478 = vadd.f32 %v275, %v477
  %479 = vdwg.mxu0
  %480 = vmatprep.subr.mxu0 0.0
  %481 = vmatpush1.msra.mxu0 0.0
  %482 = vmatprep.subr.mxu0 0.0
  %483 = vmatpush1.msra.mxu0 0.0
  %484 = vmatprep.subr.mxu0 0.0
  %485 = vmatpush1.msra.mxu0 0.0
  %486 = vmatprep.subr.mxu0 0.0
  %487 = vmatpush1.msra.mxu0 0.0
  %488 = vmatprep.subr.mxu0 0.0
  %489 = vmatpush1.msra.mxu0 0.0
  %490 = vmatprep.subr.mxu0 0.0
  %491 = vmatpush1.msra.mxu0 0.0
  %492 = vmatprep.subr.mxu0 0.0
  %493 = vmatpush1.msra.mxu0 0.0
  %494 = vmatprep.subr.mxu0 0.0
  %495 = vmatpush1.msra.mxu0 0.0
  %496 = vmatprep.subr.mxu0 0.0
  %497 = vmatpush1.msra.mxu0 0.0
  %498 = vmatprep.subr.mxu0 0.0
  %499 = vmatpush1.msra.mxu0 0.0
  %500 = vmatprep.subr.mxu0 0.0
  %501 = vmatpush1.msra.mxu0 0.0
  %502 = vmatprep.subr.mxu0 %v300
  %503 = vmatpush1.msra.mxu0 %v298
  %504 = vmatprep.subr.mxu0 %v248
  %505 = vmatpush1.msra.mxu0 %v247
  %506 = vmatprep.subr.mxu0 %v242
  %507 = vmatpush1.msra.mxu0 %v241
  %508 = vmatprep.subr.mxu0 %v236
  %509 = vmatpush1.msra.mxu0 %v235
  %510 = vmatprep.subr.mxu0 %v230
  %511 = vmatpush1.msra.mxu0 %v229
  %512 = vmatprep.subr.mxu0 0.0
  %513 = vmatpush2.msra.mxu0 0.0
  %514 = vmatprep.subr.mxu0 0.0
  %515 = vmatpush2.msra.mxu0 0.0
  %516 = vmatprep.subr.mxu0 0.0
  %517 = vmatpush2.msra.mxu0 0.0
  %518 = vmatprep.subr.mxu0 0.0
  %519 = vmatpush2.msra.mxu0 0.0
  %520 = vmatprep.subr.mxu0 0.0
  %521 = vmatpush2.msra.mxu0 0.0
  %522 = vmatprep.subr.mxu0 0.0
  %523 = vmatpush2.msra.mxu0 0.0
  %524 = vmatprep.subr.mxu0 0.0
  %525 = vmatpush2.msra.mxu0 0.0
  %526 = vmatprep.subr.mxu0 0.0
  %527 = vmatpush2.msra.mxu0 0.0
  %528 = vmatprep.subr.mxu0 0.0
  %529 = vmatpush2.msra.mxu0 0.0
  %530 = vmatprep.subr.mxu0 0.0
  %531 = vmatpush2.msra.mxu0 0.0
  %532 = vmatprep.subr.mxu0 0.0
  %533 = vmatpush2.msra.mxu0 0.0
  %534 = vmatprep.subr.mxu0 0.0
  %535 = vmatpush2.msra.mxu0 0.0
  %536 = vmatprep.subr.mxu0 0.0
  %537 = vmatpush2.msra.mxu0 0.0
  %538 = vmatprep.subr.mxu0 0.0
  %539 = vmatpush2.msra.mxu0 0.0
  %540 = vmatprep.subr.mxu0 0.0
  %541 = vmatpush2.msra.mxu0 0.0
  %542 = vmatprep.subr.mxu0 0.0
  %543 = vmatpush2.msra.mxu0 0.0
  %544 = vmatprep.mubr.f32.mxu0 0.0
  %545 = vmatmul.mubr.f32.gmra.mxu0 %v279
  %v546 = vpop.f32.mrf.mxu0
  %v547 = vadd.f32 %v260, %v546
  %v548 = vpop.f32.mrf.mxu0
  %v549 = vadd.f32 %v260, %v548
  %550 = vmatprep.mubr.f32.mxu0 0.0
  %551 = vmatmul.mubr.f32.gmra.mxu0 %v282
  %v552 = vpop.f32.mrf.mxu0
  %v553 = vadd.f32 %v265, %v552
  %v554 = vpop.f32.mrf.mxu0
  %v555 = vadd.f32 %v265, %v554
  %556 = vmatprep.mubr.f32.mxu0 0.0
  %557 = vmatmul.mubr.f32.gmra.mxu0 %v285
  %v558 = vpop.f32.mrf.mxu0
  %v559 = vadd.f32 %v270, %v558
  %v560 = vpop.f32.mrf.mxu0
  %v561 = vadd.f32 %v270, %v560
  %562 = vmatprep.mubr.f32.mxu0 0.0
  %563 = vmatmul.mubr.f32.gmra.mxu0 %v288
  %v564 = vpop.f32.mrf.mxu0
  %v565 = vadd.f32 %v275, %v564
  %v566 = vpop.f32.mrf.mxu0
  %v567 = vadd.f32 %v275, %v566
  %568 = vdwg.mxu0
  %v569 = vmax.f32 %v369, 0.0
  %v570 = vmax.f32 %v371, 0.0
  %v571 = vmax.f32 %v458, 0.0
  %v572 = vmax.f32 %v460, 0.0
  %v573 = vmax.f32 %v547, 0.0
  %v574 = vmax.f32 %v549, 0.0
  %v575 = vmax.f32 %v375, 0.0
  %v576 = vmax.f32 %v377, 0.0
  %v577 = vmax.f32 %v464, 0.0
  %v578 = vmax.f32 %v466, 0.0
  %v579 = vmax.f32 %v553, 0.0
  %v580 = vmax.f32 %v555, 0.0
  %v581 = vmax.f32 %v381, 0.0
  %v582 = vmax.f32 %v383, 0.0
  %v583 = vmax.f32 %v470, 0.0
  %v584 = vmax.f32 %v472, 0.0
  %v585 = vmax.f32 %v559, 0.0
  %v586 = vmax.f32 %v561, 0.0
  %v587 = vmax.f32 %v387, 0.0
  %v588 = vmax.f32 %v389, 0.0
  %v589 = vmax.f32 %v476, 0.0
  %v590 = vmax.f32 %v478, 0.0
  %v591 = vmax.f32 %v565, 0.0
  %v592 = vmax.f32 %v567, 0.0
  %v593 = vld [vmem:[%s3] sm:$0xff]
  %v594 = vld [vmem:[%s3 + $0x8] sm:$0xf]
  %v597 = vcombine.high %v593, %v593
  %v599 = vunpack.c.l.s4 1983009808
  %v600 = vunpack.c.0.s8 %v599
  %v601 = vlaneseq
  %v602 = vshrl.u32 %v601, 7
  %v603 = vsub.s32 %v600, %v602
  %v604 = vrot.slane %v593, %v603
  %v606 = vunpack.c.l.s4 1983009808
  %v607 = vunpack.c.0.s8 %v606
  %v608 = vlaneseq
  %v609 = vshrl.u32 %v608, 7
  %v610 = vsub.s32 %v607, %v609
  %v611 = vrot.slane %v597, %v610
  %v612 = vcombine.high %v604, %v604
  %v613 = vcombine.high %v611, %v611
  %v615 = vunpack.c.l.s4 1983009808
  %v616 = vunpack.c.0.s8 %v615
  %v617 = vlaneseq
  %v618 = vshrl.u32 %v617, 7
  %v619 = vsub.s32 %v616, %v618
  %v620 = vrot.slane %v594, %v619
  %v621 = vcombine.high %v620, %v620
  %vm627 = vcmask 97280
  %v628 = vsel %vm627, %v621, 0
  %v631 = vsel %vm627, %v574, 0
  %v634 = vsel %vm627, %v580, 0
  %v637 = vsel %vm627, %v586, 0
  %v640 = vsel %vm627, %v592, 0
  %642 = vmatprep.subr.mxu0 0.0
  %643 = vmatpush1.xpose.msra.mxu0 0.0
  %644 = vmatprep.subr.mxu0 0.0
  %645 = vmatpush1.xpose.msra.mxu0 0.0
  %646 = vmatprep.subr.mxu0 0.0
  %647 = vmatpush1.xpose.msra.mxu0 0.0
  %648 = vmatprep.subr.mxu0 0.0
  %649 = vmatpush1.xpose.msra.mxu0 0.0
  %650 = vmatprep.subr.mxu0 0.0
  %651 = vmatpush1.xpose.msra.mxu0 0.0
  %652 = vmatprep.subr.mxu0 0.0
  %653 = vmatpush1.xpose.msra.mxu0 0.0
  %654 = vmatprep.subr.mxu0 0.0
  %655 = vmatpush1.xpose.msra.mxu0 0.0
  %656 = vmatprep.subr.mxu0 0.0
  %657 = vmatpush1.xpose.msra.mxu0 0.0
  %658 = vmatprep.subr.mxu0 0.0
  %659 = vmatpush1.xpose.msra.mxu0 0.0
  %660 = vmatprep.subr.mxu0 0.0
  %661 = vmatpush1.xpose.msra.mxu0 0.0
  %662 = vmatprep.subr.mxu0 0.0
  %663 = vmatpush1.xpose.msra.mxu0 0.0
  %664 = vmatprep.subr.mxu0 0.0
  %665 = vmatpush1.xpose.msra.mxu0 0.0
  %666 = vmatprep.subr.mxu0 %v588
  %667 = vmatpush1.xpose.msra.mxu0 %v587
  %668 = vmatprep.subr.mxu0 %v582
  %669 = vmatpush1.xpose.msra.mxu0 %v581
  %670 = vmatprep.subr.mxu0 %v576
  %671 = vmatpush1.xpose.msra.mxu0 %v575
  %672 = vmatprep.subr.mxu0 %v570
  %673 = vmatpush1.xpose.msra.mxu0 %v569
  %674 = vmatprep.subr.mxu0 0.0
  %675 = vmatpush2.xpose.msra.mxu0 0.0
  %676 = vmatprep.subr.mxu0 0.0
  %677 = vmatpush2.xpose.msra.mxu0 0.0
  %678 = vmatprep.subr.mxu0 0.0
  %679 = vmatpush2.xpose.msra.mxu0 0.0
  %680 = vmatprep.subr.mxu0 0.0
  %681 = vmatpush2.xpose.msra.mxu0 0.0
  %682 = vmatprep.subr.mxu0 0.0
  %683 = vmatpush2.xpose.msra.mxu0 0.0
  %684 = vmatprep.subr.mxu0 0.0
  %685 = vmatpush2.xpose.msra.mxu0 0.0
  %686 = vmatprep.subr.mxu0 0.0
  %687 = vmatpush2.xpose.msra.mxu0 0.0
  %688 = vmatprep.subr.mxu0 0.0
  %689 = vmatpush2.xpose.msra.mxu0 0.0
  %690 = vmatprep.subr.mxu0 0.0
  %691 = vmatpush2.xpose.msra.mxu0 0.0
  %692 = vmatprep.subr.mxu0 0.0
  %693 = vmatpush2.xpose.msra.mxu0 0.0
  %694 = vmatprep.subr.mxu0 0.0
  %695 = vmatpush2.xpose.msra.mxu0 0.0
  %696 = vmatprep.subr.mxu0 0.0
  %697 = vmatpush2.xpose.msra.mxu0 0.0
  %698 = vmatprep.subr.mxu0 0.0
  %699 = vmatpush2.xpose.msra.mxu0 0.0
  %700 = vmatprep.subr.mxu0 0.0
  %701 = vmatpush2.xpose.msra.mxu0 0.0
  %702 = vmatprep.subr.mxu0 0.0
  %703 = vmatpush2.xpose.msra.mxu0 0.0
  %704 = vmatprep.subr.mxu0 0.0
  %705 = vmatpush2.xpose.msra.mxu0 0.0
  %706 = vmatprep.mubr.f32.mxu0 %v612
  %707 = vmatmul.mubr.f32.gmra.mxu0 %v604
  %v708 = vpop.f32.mrf.mxu0
  %v709 = vadd.f32 0.0, %v708
  %v710 = vpop.f32.mrf.mxu0
  %711 = vdwg.mxu0
  %712 = vmatprep.subr.mxu0 0.0
  %713 = vmatpush1.xpose.msra.mxu0 0.0
  %714 = vmatprep.subr.mxu0 0.0
  %715 = vmatpush1.xpose.msra.mxu0 0.0
  %716 = vmatprep.subr.mxu0 0.0
  %717 = vmatpush1.xpose.msra.mxu0 0.0
  %718 = vmatprep.subr.mxu0 0.0
  %719 = vmatpush1.xpose.msra.mxu0 0.0
  %720 = vmatprep.subr.mxu0 0.0
  %721 = vmatpush1.xpose.msra.mxu0 0.0
  %722 = vmatprep.subr.mxu0 0.0
  %723 = vmatpush1.xpose.msra.mxu0 0.0
  %724 = vmatprep.subr.mxu0 0.0
  %725 = vmatpush1.xpose.msra.mxu0 0.0
  %726 = vmatprep.subr.mxu0 0.0
  %727 = vmatpush1.xpose.msra.mxu0 0.0
  %728 = vmatprep.subr.mxu0 0.0
  %729 = vmatpush1.xpose.msra.mxu0 0.0
  %730 = vmatprep.subr.mxu0 0.0
  %731 = vmatpush1.xpose.msra.mxu0 0.0
  %732 = vmatprep.subr.mxu0 0.0
  %733 = vmatpush1.xpose.msra.mxu0 0.0
  %734 = vmatprep.subr.mxu0 0.0
  %735 = vmatpush1.xpose.msra.mxu0 0.0
  %736 = vmatprep.subr.mxu0 %v590
  %737 = vmatpush1.xpose.msra.mxu0 %v589
  %738 = vmatprep.subr.mxu0 %v584
  %739 = vmatpush1.xpose.msra.mxu0 %v583
  %740 = vmatprep.subr.mxu0 %v578
  %741 = vmatpush1.xpose.msra.mxu0 %v577
  %742 = vmatprep.subr.mxu0 %v572
  %743 = vmatpush1.xpose.msra.mxu0 %v571
  %744 = vmatprep.subr.mxu0 0.0
  %745 = vmatpush2.xpose.msra.mxu0 0.0
  %746 = vmatprep.subr.mxu0 0.0
  %747 = vmatpush2.xpose.msra.mxu0 0.0
  %748 = vmatprep.subr.mxu0 0.0
  %749 = vmatpush2.xpose.msra.mxu0 0.0
  %750 = vmatprep.subr.mxu0 0.0
  %751 = vmatpush2.xpose.msra.mxu0 0.0
  %752 = vmatprep.subr.mxu0 0.0
  %753 = vmatpush2.xpose.msra.mxu0 0.0
  %754 = vmatprep.subr.mxu0 0.0
  %755 = vmatpush2.xpose.msra.mxu0 0.0
  %756 = vmatprep.subr.mxu0 0.0
  %757 = vmatpush2.xpose.msra.mxu0 0.0
  %758 = vmatprep.subr.mxu0 0.0
  %759 = vmatpush2.xpose.msra.mxu0 0.0
  %760 = vmatprep.subr.mxu0 0.0
  %761 = vmatpush2.xpose.msra.mxu0 0.0
  %762 = vmatprep.subr.mxu0 0.0
  %763 = vmatpush2.xpose.msra.mxu0 0.0
  %764 = vmatprep.subr.mxu0 0.0
  %765 = vmatpush2.xpose.msra.mxu0 0.0
  %766 = vmatprep.subr.mxu0 0.0
  %767 = vmatpush2.xpose.msra.mxu0 0.0
  %768 = vmatprep.subr.mxu0 0.0
  %769 = vmatpush2.xpose.msra.mxu0 0.0
  %770 = vmatprep.subr.mxu0 0.0
  %771 = vmatpush2.xpose.msra.mxu0 0.0
  %772 = vmatprep.subr.mxu0 0.0
  %773 = vmatpush2.xpose.msra.mxu0 0.0
  %774 = vmatprep.subr.mxu0 0.0
  %775 = vmatpush2.xpose.msra.mxu0 0.0
  %776 = vmatprep.mubr.f32.mxu0 %v613
  %777 = vmatmul.mubr.f32.gmra.mxu0 %v611
  %v778 = vpop.f32.mrf.mxu0
  %v779 = vadd.f32 %v709, %v778
  %v780 = vpop.f32.mrf.mxu0
  %781 = vdwg.mxu0
  %782 = vmatprep.subr.mxu0 0.0
  %783 = vmatpush1.xpose.msra.mxu0 0.0
  %784 = vmatprep.subr.mxu0 0.0
  %785 = vmatpush1.xpose.msra.mxu0 0.0
  %786 = vmatprep.subr.mxu0 0.0
  %787 = vmatpush1.xpose.msra.mxu0 0.0
  %788 = vmatprep.subr.mxu0 0.0
  %789 = vmatpush1.xpose.msra.mxu0 0.0
  %790 = vmatprep.subr.mxu0 0.0
  %791 = vmatpush1.xpose.msra.mxu0 0.0
  %792 = vmatprep.subr.mxu0 0.0
  %793 = vmatpush1.xpose.msra.mxu0 0.0
  %794 = vmatprep.subr.mxu0 0.0
  %795 = vmatpush1.xpose.msra.mxu0 0.0
  %796 = vmatprep.subr.mxu0 0.0
  %797 = vmatpush1.xpose.msra.mxu0 0.0
  %798 = vmatprep.subr.mxu0 0.0
  %799 = vmatpush1.xpose.msra.mxu0 0.0
  %800 = vmatprep.subr.mxu0 0.0
  %801 = vmatpush1.xpose.msra.mxu0 0.0
  %802 = vmatprep.subr.mxu0 0.0
  %803 = vmatpush1.xpose.msra.mxu0 0.0
  %804 = vmatprep.subr.mxu0 0.0
  %805 = vmatpush1.xpose.msra.mxu0 0.0
  %806 = vmatprep.subr.mxu0 %v640
  %807 = vmatpush1.xpose.msra.mxu0 %v591
  %808 = vmatprep.subr.mxu0 %v637
  %809 = vmatpush1.xpose.msra.mxu0 %v585
  %810 = vmatprep.subr.mxu0 %v634
  %811 = vmatpush1.xpose.msra.mxu0 %v579
  %812 = vmatprep.subr.mxu0 %v631
  %813 = vmatpush1.xpose.msra.mxu0 %v573
  %814 = vmatprep.subr.mxu0 0.0
  %815 = vmatpush2.xpose.msra.mxu0 0.0
  %816 = vmatprep.subr.mxu0 0.0
  %817 = vmatpush2.xpose.msra.mxu0 0.0
  %818 = vmatprep.subr.mxu0 0.0
  %819 = vmatpush2.xpose.msra.mxu0 0.0
  %820 = vmatprep.subr.mxu0 0.0
  %821 = vmatpush2.xpose.msra.mxu0 0.0
  %822 = vmatprep.subr.mxu0 0.0
  %823 = vmatpush2.xpose.msra.mxu0 0.0
  %824 = vmatprep.subr.mxu0 0.0
  %825 = vmatpush2.xpose.msra.mxu0 0.0
  %826 = vmatprep.subr.mxu0 0.0
  %827 = vmatpush2.xpose.msra.mxu0 0.0
  %828 = vmatprep.subr.mxu0 0.0
  %829 = vmatpush2.xpose.msra.mxu0 0.0
  %830 = vmatprep.subr.mxu0 0.0
  %831 = vmatpush2.xpose.msra.mxu0 0.0
  %832 = vmatprep.subr.mxu0 0.0
  %833 = vmatpush2.xpose.msra.mxu0 0.0
  %834 = vmatprep.subr.mxu0 0.0
  %835 = vmatpush2.xpose.msra.mxu0 0.0
  %836 = vmatprep.subr.mxu0 0.0
  %837 = vmatpush2.xpose.msra.mxu0 0.0
  %838 = vmatprep.subr.mxu0 0.0
  %839 = vmatpush2.xpose.msra.mxu0 0.0
  %840 = vmatprep.subr.mxu0 0.0
  %841 = vmatpush2.xpose.msra.mxu0 0.0
  %842 = vmatprep.subr.mxu0 0.0
  %843 = vmatpush2.xpose.msra.mxu0 0.0
  %844 = vmatprep.subr.mxu0 0.0
  %845 = vmatpush2.xpose.msra.mxu0 0.0
  %846 = vmatprep.mubr.f32.mxu0 %v628
  %847 = vmatmul.mubr.f32.gmra.mxu0 %v620
  %v848 = vpop.f32.mrf.mxu0
  %v849 = vadd.f32 %v779, %v848
  %v850 = vpop.f32.mrf.mxu0
  %851 = vdwg.mxu0
  %v852 = vld [vmem:[%s4] sm:$0xff]
  %v853 = vld [vmem:[%s4 + $0x8] sm:$0xff]
  %v854 = vld [vmem:[%s4 + $0x10] sm:$0xff]
  %v855 = vld [vmem:[%s4 + $0x18] sm:$0xff]
  %v856 = vld [vmem:[%s4 + $0x20] sm:$0xff]
  %v857 = vld [vmem:[%s4 + $0x28] sm:$0xff]
  %v858 = vld [vmem:[%s4 + $0x30] sm:$0xff]
  %v859 = vld [vmem:[%s4 + $0x38] sm:$0xff]
  %v860 = vld [vmem:[%s5] sm:$0x3]
  %v862 = vlaneseq
  %v863 = vshrl.u32 %v862, 7
  %v864 = vsub.s32 0, %v863
  %v865 = vrot.slane %v860, %v864
  %v866 = vlaneseq
  %v867 = vshrl.u32 %v866, 7
  %v868 = vsub.s32 1, %v867
  %v869 = vrot.slane %v860, %v868
  %vm872 = vcmask 261120
  %v874 = vsel %vm872, %v849, 0
  %876 = vmatprep.subr.mxu0 0.0
  %877 = vmatpush1.msra.mxu0 0.0
  %878 = vmatprep.subr.mxu0 0.0
  %879 = vmatpush1.msra.mxu0 0.0
  %880 = vmatprep.subr.mxu0 0.0
  %881 = vmatpush1.msra.mxu0 0.0
  %882 = vmatprep.subr.mxu0 0.0
  %883 = vmatpush1.msra.mxu0 0.0
  %884 = vmatprep.subr.mxu0 0.0
  %885 = vmatpush1.msra.mxu0 0.0
  %886 = vmatprep.subr.mxu0 0.0
  %887 = vmatpush1.msra.mxu0 0.0
  %888 = vmatprep.subr.mxu0 0.0
  %889 = vmatpush1.msra.mxu0 0.0
  %890 = vmatprep.subr.mxu0 0.0
  %891 = vmatpush1.msra.mxu0 0.0
  %892 = vmatprep.subr.mxu0 0.0
  %893 = vmatpush1.msra.mxu0 0.0
  %894 = vmatprep.subr.mxu0 0.0
  %895 = vmatpush1.msra.mxu0 0.0
  %896 = vmatprep.subr.mxu0 0.0
  %897 = vmatpush1.msra.mxu0 0.0
  %898 = vmatprep.subr.mxu0 0.0
  %899 = vmatpush1.msra.mxu0 0.0
  %900 = vmatprep.subr.mxu0 %v859
  %901 = vmatpush1.msra.mxu0 %v858
  %902 = vmatprep.subr.mxu0 %v857
  %903 = vmatpush1.msra.mxu0 %v856
  %904 = vmatprep.subr.mxu0 %v855
  %905 = vmatpush1.msra.mxu0 %v854
  %906 = vmatprep.subr.mxu0 %v853
  %907 = vmatpush1.msra.mxu0 %v852
  %908 = vmatprep.subr.mxu0 0.0
  %909 = vmatpush2.msra.mxu0 0.0
  %910 = vmatprep.subr.mxu0 0.0
  %911 = vmatpush2.msra.mxu0 0.0
  %912 = vmatprep.subr.mxu0 0.0
  %913 = vmatpush2.msra.mxu0 0.0
  %914 = vmatprep.subr.mxu0 0.0
  %915 = vmatpush2.msra.mxu0 0.0
  %916 = vmatprep.subr.mxu0 0.0
  %917 = vmatpush2.msra.mxu0 0.0
  %918 = vmatprep.subr.mxu0 0.0
  %919 = vmatpush2.msra.mxu0 0.0
  %920 = vmatprep.subr.mxu0 0.0
  %921 = vmatpush2.msra.mxu0 0.0
  %922 = vmatprep.subr.mxu0 0.0
  %923 = vmatpush2.msra.mxu0 0.0
  %924 = vmatprep.subr.mxu0 0.0
  %925 = vmatpush2.msra.mxu0 0.0
  %926 = vmatprep.subr.mxu0 0.0
  %927 = vmatpush2.msra.mxu0 0.0
  %928 = vmatprep.subr.mxu0 0.0
  %929 = vmatpush2.msra.mxu0 0.0
  %930 = vmatprep.subr.mxu0 0.0
  %931 = vmatpush2.msra.mxu0 0.0
  %932 = vmatprep.subr.mxu0 0.0
  %933 = vmatpush2.msra.mxu0 0.0
  %934 = vmatprep.subr.mxu0 0.0
  %935 = vmatpush2.msra.mxu0 0.0
  %936 = vmatprep.subr.mxu0 0.0
  %937 = vmatpush2.msra.mxu0 0.0
  %938 = vmatprep.subr.mxu0 0.0
  %939 = vmatpush2.msra.mxu0 0.0
  %940 = vmatprep.mubr.f32.mxu0 0.0
  %941 = vmatmul.mubr.f32.gmra.mxu0 %v874
  %v942 = vpop.f32.mrf.mxu0
  %v943 = vadd.f32 %v865, %v942
  %v944 = vpop.f32.mrf.mxu0
  %v945 = vadd.f32 %v869, %v944
  %946 = vdwg.mxu0
  %v949 = vcombine.low %v943, %v945
  %v951 = vunpack.c.l.s4 1983009808
  %v952 = vunpack.c.0.s8 %v951
  %v953 = vlaneseq
  %v954 = vshrl.u32 %v953, 7
  %v955 = vsub.s32 %v952, %v954
  %v956 = vrot.slane %v949, %v955
  %958 = vst [vmem:[%s6] sm:$0xf] %v956
  // Predicated region
  $region26: #{cil_model_forward.1} parent=0 // pred_check
    _
  $region27: #{cil_model_forward.1} parent=0 // pred_check_branch
    %960 = sbr.rel (0) target = $region29
  $region28: #{cil_model_forward.1} parent=0 // pred_region
    _
  $region29: #{cil_model_forward.1} parent=0 // pred_fallthru
    _
  // Predicated region
  $region30: #{cil_model_forward.1} parent=0 // pred_check
    _
  $region31: #{cil_model_forward.1} parent=0 // pred_check_branch
    %962 = sbr.rel (0) target = $region33
  $region32: #{cil_model_forward.1} parent=0 // pred_region
    _
  $region33: #{cil_model_forward.1} parent=0 // pred_fallthru
    _

</llo_original>
